<compile_context>
chip_gen: v7x
topology: tpu7x:2x2x1
jax: 0.10.0
libtpu: 0.0.40
codegen_flags: <defaults>
</compile_context>

<pallas_src>
import jax
import jax.numpy as jnp
from jax import lax
from jax.experimental import pallas as pl
from jax.experimental.pallas import tpu as pltpu


def _round_up(n, m):
    return (n + m - 1) // m * m


def _vmem_limit_bytes():
    # Generation-aware VMEM limit: ~75% of physical capacity
    # (v5e/v6e: 128 MiB -> 96 MiB, v7x: 64 MiB -> 48 MiB), leaving headroom
    # for compiler scratch.  Fall back to the compiler default if the query
    # is unavailable.
    try:
        cap = pltpu.get_tpu_info().vmem_capacity_bytes
        return int(cap) * 3 // 4
    except Exception:
        return None


def _compiler_params(dim_sem):
    kwargs = dict(dimension_semantics=dim_sem)
    limit = _vmem_limit_bytes()
    if limit is not None:
        kwargs["vmem_limit_bytes"] = limit
    return pltpu.CompilerParams(**kwargs)


# ---------------------------------------------------------------------------
# Kernel bodies
# ---------------------------------------------------------------------------

def _fused_kernel(x_ref, w_ref, b_ref, o_ref):
    """Single-vocab-tile fast path: projection + log_softmax fully fused.

    x_ref: (tm, d_model)        row tile
    w_ref: (vocab_p, d_model)   weight in torch layout (no transpose)
    b_ref: (1, vocab_p) f32     bias; padded vocab columns hold -1e30
    o_ref: (tm, vocab_p)        log-probabilities
    """
    logits = lax.dot_general(
        x_ref[...], w_ref[...],
        dimension_numbers=(((1,), (1,)), ((), ())),   # x @ w.T, f32 accum
        preferred_element_type=jnp.float32) + b_ref[...]
    m = jnp.max(logits, axis=-1, keepdims=True)
    logits = logits - m                  # reuse buffer; single f32 intermediate
    lse = jnp.log(jnp.sum(jnp.exp(logits), axis=-1, keepdims=True))
    o_ref[...] = (logits - lse).astype(o_ref.dtype)


def _logits_lse_kernel(x_ref, w_ref, b_ref, logits_ref, lse_ref, m_sc, l_sc):
    """Pass 1 (vocab-tiled path): stream vocab tiles, write raw f32 logits and
    maintain an online softmax normalizer (running max / sum-exp) per row."""
    j = pl.program_id(1)

    @pl.when(j == 0)
    def _():
        m_sc[...] = jnp.full_like(m_sc, -1e30)
        l_sc[...] = jnp.zeros_like(l_sc)

    logits = lax.dot_general(
        x_ref[...], w_ref[...],
        dimension_numbers=(((1,), (1,)), ((), ())),
        preferred_element_type=jnp.float32) + b_ref[...]
    logits_ref[...] = logits

    m_prev = m_sc[...]
    m_new = jnp.maximum(m_prev, jnp.max(logits, axis=-1, keepdims=True))
    l_sc[...] = (l_sc[...] * jnp.exp(m_prev - m_new)
                 + jnp.sum(jnp.exp(logits - m_new), axis=-1, keepdims=True))
    m_sc[...] = m_new

    @pl.when(j == pl.num_programs(1) - 1)
    def _():
        lse_ref[...] = m_sc[...] + jnp.log(l_sc[...])


def _normalize_kernel(logits_ref, lse_ref, o_ref):
    """Pass 2: elementwise logits - logsumexp (lane-dense streaming tiles)."""
    o_ref[...] = (logits_ref[...] - lse_ref[...]).astype(o_ref.dtype)


# ---------------------------------------------------------------------------
# Wrapper
# ---------------------------------------------------------------------------

def generator_forward(x, weight, bias, *, tm=256, tn=2048):
    """log_softmax(x @ weight.T + bias, axis=-1)  (== Generator.forward).

    x:      (batch, seq, d_model)   f32 or bf16
    weight: (vocab, d_model)        torch nn.Linear layout (NOT transposed)
    bias:   (vocab,)
    """
    B, S, d_model = x.shape
    vocab = weight.shape[0]
    M = B * S
    out_dtype = x.dtype
    itemsize = jnp.dtype(x.dtype).itemsize

    # --- row tiling: sublane granularity 8 (32-bit) / 16 (16-bit) ----------
    sub = 16 if itemsize == 2 else 8
    tm = max(sub, min(tm, _round_up(M, sub)))
    M_p = _round_up(M, tm)

    # --- vocab tiling: lane-dense tiles, multiple of 128 --------------------
    tn = max(128, min(_round_up(tn, 128), _round_up(vocab, 128)))
    vocab_p = _round_up(vocab, tn)
    n_i = M_p // tm
    n_j = vocab_p // tn

    # --- operand prep (no transpose; pad only when shapes are unaligned) ---
    x2d = x.reshape(M, d_model)
    if M_p != M:
        x2d = jnp.pad(x2d, ((0, M_p - M), (0, 0)))

    w_p = weight.astype(x.dtype)           # match matmul operand dtype (bf16 OK)
    b_f32 = bias.astype(jnp.float32)
    if vocab_p != vocab:
        # Padded vocab rows: zero weights + very negative (finite) bias so
        # exp(logit - max) underflows to 0 and the normalizer is unaffected.
        # Keep vocab a multiple of 128 at the model level to skip this pad.
        w_p = jnp.pad(w_p, ((0, vocab_p - vocab), (0, 0)))
        b_f32 = jnp.pad(b_f32, (0, vocab_p - vocab), constant_values=-1e30)
    b2d = b_f32.reshape(1, vocab_p)

    cost = pl.CostEstimate(
        flops=2 * M_p * d_model * vocab_p + 5 * M_p * vocab_p,
        transcendentals=M_p * vocab_p + M_p,
        bytes_accessed=(M_p * d_model * itemsize
                        + vocab_p * d_model * itemsize
                        + vocab_p * 4
                        + M_p * vocab_p * 4),
    )

    if n_j == 1:
        # Fast path: whole (padded) vocab fits one lane tile -> fused kernel,
        # weight stays VMEM-resident, no extra HBM round trip for logits.
        out2d = pl.pallas_call(
            _fused_kernel,
            out_shape=jax.ShapeDtypeStruct((M_p, vocab_p), out_dtype),
            grid_spec=pltpu.PrefetchScalarGridSpec(
                num_scalar_prefetch=0,
                grid=(n_i,),
                in_specs=[
                    pl.BlockSpec((tm, d_model), lambda i: (i, 0)),        # x rows
                    pl.BlockSpec((vocab_p, d_model), lambda i: (0, 0)),   # weight
                    pl.BlockSpec((1, vocab_p), lambda i: (0, 0)),         # bias
                ],
                out_specs=pl.BlockSpec((tm, vocab_p), lambda i: (i, 0)),
            ),
            compiler_params=_compiler_params(("parallel",)),
            cost_estimate=cost,
        )(x2d, w_p, b2d)
    else:
        # Vocab-tiled two-pass path: bounded VMEM for any vocab / d_model.
        # Pass 1: raw f32 logits + per-row logsumexp (vocab axis "arbitrary",
        # last in grid; (tm,1) stats output resident across it).
        logits, lse = pl.pallas_call(
            _logits_lse_kernel,
            out_shape=(jax.ShapeDtypeStruct((M_p, vocab_p), jnp.float32),
                       jax.ShapeDtypeStruct((M_p, 1), jnp.float32)),
            grid_spec=pltpu.PrefetchScalarGridSpec(
                num_scalar_prefetch=0,
                grid=(n_i, n_j),
                in_specs=[
                    pl.BlockSpec((tm, d_model), lambda i, j: (i, 0)),  # x rows
                    pl.BlockSpec((tn, d_model), lambda i, j: (j, 0)),  # W tile
                    pl.BlockSpec((1, tn), lambda i, j: (0, j)),        # bias tile
                ],
                out_specs=(
                    pl.BlockSpec((tm, tn), lambda i, j: (i, j)),       # logits
                    pl.BlockSpec((tm, 1), lambda i, j: (i, 0)),        # lse
                ),
                scratch_shapes=[pltpu.VMEM((tm, 1), jnp.float32),      # running max
                                pltpu.VMEM((tm, 1), jnp.float32)],     # running sum
            ),
            compiler_params=_compiler_params(("parallel", "arbitrary")),
            cost_estimate=cost,
        )(x2d, w_p, b2d)

        # Pass 2: elementwise normalization.
        out2d = pl.pallas_call(
            _normalize_kernel,
            out_shape=jax.ShapeDtypeStruct((M_p, vocab_p), out_dtype),
            grid_spec=pltpu.PrefetchScalarGridSpec(
                num_scalar_prefetch=0,
                grid=(n_i, n_j),
                in_specs=[
                    pl.BlockSpec((tm, tn), lambda i, j: (i, j)),
                    pl.BlockSpec((tm, 1), lambda i, j: (i, 0)),
                ],
                out_specs=pl.BlockSpec((tm, tn), lambda i, j: (i, j)),
            ),
            compiler_params=_compiler_params(("parallel", "parallel")),
        )(logits, lse)

    if M_p != M or vocab_p != vocab:
        out2d = out2d[:M, :vocab]
    return out2d.reshape(B, S, vocab)


# ---------------------------------------------------------------------------
# Self-test
# ---------------------------------------------------------------------------

if __name__ == "__main__":
    B, S, d_model, vocab = 2, 8, 32, 128

    key = jax.random.PRNGKey(0)
    kx, kw, kb = jax.random.split(key, 3)

    x = jax.random.normal(kx, (B, S, d_model), dtype=jnp.float32)

    # nn.Linear-style init, stored in torch layout: weight (vocab, d_model).
    lim = 1.0 / (d_model ** 0.5)
    weight = jax.random.uniform(kw, (vocab, d_model), jnp.float32, -lim, lim)
    bias = jax.random.uniform(kb, (vocab,), jnp.float32, -lim, lim)

    def ref_fn(xx, ww, bb):
        return jax.nn.log_softmax(xx @ ww.T + bb, axis=-1)

    # 1) lane-dense vocab (128) -> fused single-call path
    out = jax.block_until_ready(generator_forward(x, weight, bias))
    assert out.shape == (B, S, vocab)
    assert jnp.allclose(out, ref_fn(x, weight, bias), atol=1e-4, rtol=1e-4)

    # 2) non-multiple-of-128 vocab -> exercises vocab padding / -1e30 bias
    v2 = 100
    out2 = jax.block_until_ready(generator_forward(x, weight[:v2], bias[:v2]))
    assert out2.shape == (B, S, v2)
    assert jnp.allclose(out2, ref_fn(x, weight[:v2], bias[:v2]),
                        atol=1e-4, rtol=1e-4)

    # 3) multiple vocab tiles (tn=128, vocab=384) -> two-pass streaming path
    v3 = 384
    kw3, kb3 = jax.random.split(jax.random.PRNGKey(1))
    w3 = jax.random.uniform(kw3, (v3, d_model), jnp.float32, -lim, lim)
    b3 = jax.random.uniform(kb3, (v3,), jnp.float32, -lim, lim)
    out3 = jax.block_until_ready(generator_forward(x, w3, b3, tn=128))
    assert out3.shape == (B, S, v3)
    assert jnp.allclose(out3, ref_fn(x, w3, b3), atol=1e-4, rtol=1e-4)

    # 4) bf16 matmul operands (native MXU dtype; f32 accumulation + f32 softmax)
    xb = x.astype(jnp.bfloat16)
    wb = weight.astype(jnp.bfloat16)
    out4 = jax.block_until_ready(generator_forward(xb, wb, bias))
    ref4 = ref_fn(xb.astype(jnp.float32), wb.astype(jnp.float32), bias)
    assert out4.dtype == jnp.bfloat16
    assert jnp.allclose(out4.astype(jnp.float32), ref4, atol=1e-1, rtol=1e-2)

    print("KERNEL_OK")
</pallas_src>

<mosaic_0001>
module attributes {stable_mosaic.version = 11 : i64} {
  func.func @_fused_kernel(%arg0: i32, %arg1: memref<16x32xf32, #tpu.memory_space<vmem>>, %arg2: memref<128x32xf32, #tpu.memory_space<vmem>>, %arg3: memref<1x128xf32, #tpu.memory_space<vmem>>, %arg4: memref<16x128xf32, #tpu.memory_space<vmem>>) attributes {dimension_semantics = [#tpu.dimension_semantics<parallel>], iteration_bounds = array<i64: 1>, scalar_prefetch = 0 : i64, scratch_operands = 0 : i64, tpu.core_type = #tpu.core_type<tc>, window_params = [{transform_indices = @transform_0, window_bounds = array<i64: 16, 32>}, {pipeline_mode = #tpu.pipeline_mode<synchronous>, transform_indices = @transform_1, window_bounds = array<i64: 128, 32>}, {pipeline_mode = #tpu.pipeline_mode<synchronous>, transform_indices = @transform_2, window_bounds = array<i64: 1, 128>}, {transform_indices = @transform_3, window_bounds = array<i64: 16, 128>}]} {
    %c0 = arith.constant 0 : index
    %c0_0 = arith.constant 0 : index
    %0 = vector.load %arg1[%c0, %c0_0] : memref<16x32xf32, #tpu.memory_space<vmem>>, vector<16x32xf32>
    %c0_1 = arith.constant 0 : index
    %c0_2 = arith.constant 0 : index
    %1 = vector.load %arg2[%c0_1, %c0_2] : memref<128x32xf32, #tpu.memory_space<vmem>>, vector<128x32xf32>
    %cst = arith.constant dense<0.000000e+00> : vector<16x128xf32>
    %2 = tpu.matmul %0, %1, %cst {dimension_numbers = #tpu.dot_dimension_numbers<[1], [1], [0], [0], [0, 0, 1, 0], [], []>} : vector<16x32xf32>, vector<128x32xf32>, vector<16x128xf32> -> vector<16x128xf32>
    %c0_3 = arith.constant 0 : index
    %c0_4 = arith.constant 0 : index
    %3 = vector.load %arg3[%c0_3, %c0_4] : memref<1x128xf32, #tpu.memory_space<vmem>>, vector<1x128xf32>
    %4 = vector.broadcast %3 : vector<1x128xf32> to vector<16x128xf32>
    %5 = arith.addf %2, %4 : vector<16x128xf32>
    %cst_5 = arith.constant dense<0xFF800000> : vector<16xf32>
    %6 = vector.multi_reduction <maximumf>, %5, %cst_5 [1] : vector<16x128xf32> to vector<16xf32>
    %7 = vector.shape_cast %6 : vector<16xf32> to vector<16x1xf32>
    %8 = vector.broadcast %7 : vector<16x1xf32> to vector<16x128xf32>
    %9 = arith.subf %5, %8 : vector<16x128xf32>
    %10 = math.exp %9 : vector<16x128xf32>
    %cst_6 = arith.constant dense<0.000000e+00> : vector<16xf32>
    %11 = vector.multi_reduction <add>, %10, %cst_6 [1] : vector<16x128xf32> to vector<16xf32>
    %12 = vector.shape_cast %11 : vector<16xf32> to vector<16x1xf32>
    %13 = math.log %12 : vector<16x1xf32>
    %14 = vector.broadcast %13 : vector<16x1xf32> to vector<16x128xf32>
    %15 = arith.subf %9, %14 : vector<16x128xf32>
    %c0_7 = arith.constant 0 : index
    %c0_8 = arith.constant 0 : index
    %16 = vector.load %arg4[%c0_7, %c0_8] : memref<16x128xf32, #tpu.memory_space<vmem>>, vector<16x128xf32>
    tpu.vector_store %arg4[%c0_7, %c0_8], %15 {strides = array<i32>} : memref<16x128xf32, #tpu.memory_space<vmem>>, vector<16x128xf32>,
    return
  }
  func.func @transform_0(%arg0: i32) -> (i32, i32) {
    %c0_i32 = arith.constant 0 : i32
    %c0_i32_0 = arith.constant 0 : i32
    return %arg0, %c0_i32 : i32, i32
  }
  func.func @transform_1(%arg0: i32) -> (i32, i32) {
    %c0_i32 = arith.constant 0 : i32
    %c0_i32_0 = arith.constant 0 : i32
    %c0_i32_1 = arith.constant 0 : i32
    return %c0_i32, %c0_i32_0 : i32, i32
  }
  func.func @transform_2(%arg0: i32) -> (i32, i32) {
    %c0_i32 = arith.constant 0 : i32
    %c0_i32_0 = arith.constant 0 : i32
    %c0_i32_1 = arith.constant 0 : i32
    return %c0_i32, %c0_i32_0 : i32, i32
  }
  func.func @transform_3(%arg0: i32) -> (i32, i32) {
    %c0_i32 = arith.constant 0 : i32
    %c0_i32_0 = arith.constant 0 : i32
    return %arg0, %c0_i32 : i32, i32
  }
}

</mosaic_0001>

<llo_original>
// kernel: tpu_custom_call.1
$region0: #{tpu_custom_call.1}
  #allocation0 [shape = 'u32[]', space=smem, size = 0x4, offset = 0x4, fixed_abs, tag = 'smem constant byte address 0x4 - core index']
  #allocation1 [shape = 'u32[144,128]{1,0:T(1,128)}', space=vmem, size = 0x12000, scoped, tag = 'internal scratch']
  %s0 = inlined_call_operand.vmem [shape: f32[16,32], index: 0, kind: input, shape index: {}]
  %s1 = inlined_call_operand.vmem [shape: f32[128,32], index: 1, kind: input, shape index: {}]
  %s2 = inlined_call_operand.vmem [shape: f32[1,128], index: 2, kind: input, shape index: {}]
  %s3 = inlined_call_operand.hbm [shape: f32[16,128], index: 3, kind: output, shape index: {}]
  %s4 = sld [smem:[#allocation0]]
  $region22: #{tpu_custom_call.1} parent=0
    _
  %s6 = ssub.s32 1, %s4
  %s7 = scalar_select 0, %s6, %s4
  $region1: #{tpu_custom_call.1} parent=0
    #allocation2 [shape = 'u8[8192]{0}', space=vmem, size = 0x2000, scoped, tag = 'output window, operand 0, single buffered']
    #allocation3 [shape = 's32[1]{0}', space=sflag, size = 0x4, scoped, tag = 'scoped memory for tpu_custom_call.1']
    %8 = vsyncpa [#allocation3], 0
    // Predicated region
    $region2: #{tpu_custom_call.1} parent=1 // pred_check
      _
    $region3: #{tpu_custom_call.1} parent=1 // pred_check_branch
      %10 = sbr.rel (0) target = $region5
    $region4: #{tpu_custom_call.1} parent=1 // pred_region
      _
    $region5: #{tpu_custom_call.1} parent=1 // pred_fallthru
      _
    // Predicated region
    $region6: #{tpu_custom_call.1} parent=1 // pred_check
      _
    $region7: #{tpu_custom_call.1} parent=1 // pred_check_branch
      %12 = sbr.rel (0) target = $region9
    $region8: #{tpu_custom_call.1} parent=1 // pred_region
      _
    $region9: #{tpu_custom_call.1} parent=1 // pred_fallthru
      _
    // Predicated region
    $region10: #{tpu_custom_call.1} parent=1 // pred_check
      _
    $region11: #{tpu_custom_call.1} parent=1 // pred_check_branch
      %14 = sbr.rel (0) target = $region13
    $region12: #{tpu_custom_call.1} parent=1 // pred_region
      _
    $region13: #{tpu_custom_call.1} parent=1 // pred_fallthru
      _
    %v15 = vld [vmem:[%s0] sm:$0xff]
    %v16 = vld [vmem:[%s0 + $0x8] sm:$0xff]
    %v17 = vld [vmem:[%s1] sm:$0xff]
    %v18 = vld [vmem:[%s1 + $0x8] sm:$0xff]
    %v19 = vld [vmem:[%s1 + $0x10] sm:$0xff]
    %v20 = vld [vmem:[%s1 + $0x18] sm:$0xff]
    %v21 = vld [vmem:[%s1 + $0x20] sm:$0xff]
    %v22 = vld [vmem:[%s1 + $0x28] sm:$0xff]
    %v23 = vld [vmem:[%s1 + $0x30] sm:$0xff]
    %v24 = vld [vmem:[%s1 + $0x38] sm:$0xff]
    %v25 = vld [vmem:[%s1 + $0x40] sm:$0xff]
    %v26 = vld [vmem:[%s1 + $0x48] sm:$0xff]
    %v27 = vld [vmem:[%s1 + $0x50] sm:$0xff]
    %v28 = vld [vmem:[%s1 + $0x58] sm:$0xff]
    %v29 = vld [vmem:[%s1 + $0x60] sm:$0xff]
    %v30 = vld [vmem:[%s1 + $0x68] sm:$0xff]
    %v31 = vld [vmem:[%s1 + $0x70] sm:$0xff]
    %v32 = vld [vmem:[%s1 + $0x78] sm:$0xff]
    %v33 = vld [vmem:[%s2] sm:$0x1]
    %v35 = vlaneseq
    %v36 = vshrl.u32 %v35, 7
    %v37 = vsub.s32 0, %v36
    %v38 = vrot.slane %v33, %v37
    %vm40 = vcmask 261120
    %v42 = vsel %vm40, %v15, 0
    %v45 = vsel %vm40, %v16, 0
    %v48 = vsel %vm40, %v17, 0
    %v51 = vsel %vm40, %v18, 0
    %v54 = vsel %vm40, %v19, 0
    %v57 = vsel %vm40, %v20, 0
    %v60 = vsel %vm40, %v21, 0
    %v63 = vsel %vm40, %v22, 0
    %v66 = vsel %vm40, %v23, 0
    %v69 = vsel %vm40, %v24, 0
    %v72 = vsel %vm40, %v25, 0
    %v75 = vsel %vm40, %v26, 0
    %v78 = vsel %vm40, %v27, 0
    %v81 = vsel %vm40, %v28, 0
    %v84 = vsel %vm40, %v29, 0
    %v87 = vsel %vm40, %v30, 0
    %v90 = vsel %vm40, %v31, 0
    %v93 = vsel %vm40, %v32, 0
    %95 = vmatprep.subr.mxu0 0.0
    %96 = vmatpush1.xpose.msra.mxu0 %v48
    %97 = vmatprep.subr.mxu0 0.0
    %98 = vmatpush1.xpose.msra.mxu0 %v51
    %99 = vmatprep.subr.mxu0 0.0
    %100 = vmatpush1.xpose.msra.mxu0 %v54
    %101 = vmatprep.subr.mxu0 0.0
    %102 = vmatpush1.xpose.msra.mxu0 %v57
    %103 = vmatprep.subr.mxu0 0.0
    %104 = vmatpush1.xpose.msra.mxu0 %v60
    %105 = vmatprep.subr.mxu0 0.0
    %106 = vmatpush1.xpose.msra.mxu0 %v63
    %107 = vmatprep.subr.mxu0 0.0
    %108 = vmatpush1.xpose.msra.mxu0 %v66
    %109 = vmatprep.subr.mxu0 0.0
    %110 = vmatpush1.xpose.msra.mxu0 %v69
    %111 = vmatprep.subr.mxu0 0.0
    %112 = vmatpush1.xpose.msra.mxu0 %v72
    %113 = vmatprep.subr.mxu0 0.0
    %114 = vmatpush1.xpose.msra.mxu0 %v75
    %115 = vmatprep.subr.mxu0 0.0
    %116 = vmatpush1.xpose.msra.mxu0 %v78
    %117 = vmatprep.subr.mxu0 0.0
    %118 = vmatpush1.xpose.msra.mxu0 %v81
    %119 = vmatprep.subr.mxu0 0.0
    %120 = vmatpush1.xpose.msra.mxu0 %v84
    %121 = vmatprep.subr.mxu0 0.0
    %122 = vmatpush1.xpose.msra.mxu0 %v87
    %123 = vmatprep.subr.mxu0 0.0
    %124 = vmatpush1.xpose.msra.mxu0 %v90
    %125 = vmatprep.subr.mxu0 0.0
    %126 = vmatpush1.xpose.msra.mxu0 %v93
    %127 = vmatprep.subr.mxu0 0.0
    %128 = vmatpush1.xpose.msra.mxu0 0.0
    %129 = vmatprep.subr.mxu0 0.0
    %130 = vmatpush1.xpose.msra.mxu0 0.0
    %131 = vmatprep.subr.mxu0 0.0
    %132 = vmatpush1.xpose.msra.mxu0 0.0
    %133 = vmatprep.subr.mxu0 0.0
    %134 = vmatpush1.xpose.msra.mxu0 0.0
    %135 = vmatprep.subr.mxu0 0.0
    %136 = vmatpush1.xpose.msra.mxu0 0.0
    %137 = vmatprep.subr.mxu0 0.0
    %138 = vmatpush1.xpose.msra.mxu0 0.0
    %139 = vmatprep.subr.mxu0 0.0
    %140 = vmatpush1.xpose.msra.mxu0 0.0
    %141 = vmatprep.subr.mxu0 0.0
    %142 = vmatpush1.xpose.msra.mxu0 0.0
    %143 = vmatprep.subr.mxu0 0.0
    %144 = vmatpush1.xpose.msra.mxu0 0.0
    %145 = vmatprep.subr.mxu0 0.0
    %146 = vmatpush1.xpose.msra.mxu0 0.0
    %147 = vmatprep.subr.mxu0 0.0
    %148 = vmatpush1.xpose.msra.mxu0 0.0
    %149 = vmatprep.subr.mxu0 0.0
    %150 = vmatpush1.xpose.msra.mxu0 0.0
    %151 = vmatprep.subr.mxu0 0.0
    %152 = vmatpush1.xpose.msra.mxu0 0.0
    %153 = vmatprep.subr.mxu0 0.0
    %154 = vmatpush1.xpose.msra.mxu0 0.0
    %155 = vmatprep.subr.mxu0 0.0
    %156 = vmatpush1.xpose.msra.mxu0 0.0
    %157 = vmatprep.subr.mxu0 0.0
    %158 = vmatpush1.xpose.msra.mxu0 0.0
    %159 = vmatprep.mubr.f32.mxu0 0.0
    %160 = vmatmul.mubr.f32.gmra.mrb[0].mxu0 %v42
    %v161 = vpop.f32.mrb[0].mxu0
    %v162 = vadd.f32 %v38, %v161
    %v163 = vpop.f32.mrb[0].mxu0
    %164 = vmatprep.mubr.f32.mxu0 0.0
    %165 = vmatmul.mubr.f32.gmra.mrb[0].mxu0 %v45
    %v166 = vpop.f32.mrb[0].mxu0
    %v167 = vadd.f32 %v38, %v166
    %v168 = vpop.f32.mrb[0].mxu0
    %169 = vdwg.mxu0
    %170 = vmax.xlane.f32.xlu0 %v162
    %v171 = vpop.xlane.xlu0 %170
    %172 = vmax.xlane.f32.xlu0 %v167
    %v173 = vpop.xlane.xlu0 %172
    %v174 = vsub.f32 %v162, %v171
    %v175 = vsub.f32 %v167, %v173
    %v176 = vmul.f32 %v174, 1.442695
    %v177 = vpow.pop %v176
    %v178 = vmul.f32 %v175, 1.442695
    %v179 = vpow.pop %v178
    %180 = vadd.xlane.f32.xlu0 %v177
    %v181 = vpop.xlane.xlu0 %180
    %182 = vadd.xlane.f32.xlu0 %v179
    %v183 = vpop.xlane.xlu0 %182
    %v184 = vlog2.pop %v181
    %v185 = vmul.f32 %v184, 0.6931472
    %v186 = vlog2.pop %v183
    %v187 = vmul.f32 %v186, 0.6931472
    %v188 = vsub.f32 %v174, %v185
    %v189 = vsub.f32 %v175, %v187
    %190 = vst [vmem:[#allocation2] sm:$0xff] %v188
    %191 = vst [vmem:[#allocation2 + $0x8] sm:$0xff] %v189
    // Predicated region
    $region14: #{tpu_custom_call.1} parent=1 // pred_check
      _
    $region15: #{tpu_custom_call.1} parent=1 // pred_check_branch
      %193 = sbr.rel (0) target = $region17
    $region16: #{tpu_custom_call.1} parent=1 // pred_region
      %s195 = ssub.s32 256, 256
      %196 = vsyncadd [#allocation3], %s195
      %s197 = sshll.u32 [#allocation2], 4
      %s198 = int_to_ptr.vmem [resolvable:$true] %s197
      %203 = dma.vmem_to_hbm [thread:$0]  %s198, 256, %s3, [#allocation3], 128, 128, 8
    $region17: #{tpu_custom_call.1} parent=1 // pred_fallthru
      _
    // Predicated region
    $region18: #{tpu_custom_call.1} parent=1 // pred_check
      _
    $region19: #{tpu_custom_call.1} parent=1 // pred_check_branch
      %205 = sbr.rel (0) target = $region21
    $region20: #{tpu_custom_call.1} parent=1 // pred_region
      %206 = dma.done [#allocation3], 256
    $region21: #{tpu_custom_call.1} parent=1 // pred_fallthru
      _
    %207 = vsyncpa [#allocation3], 1

</llo_original>
